<compile_context>
chip_gen: v5e
topology: v5e:2x2
jax: 0.10.0
libtpu: 0.0.40
codegen_flags: <defaults>
</compile_context>

<pallas_src>
import jax
import jax.numpy as jnp
from jax.experimental import pallas as pl
from jax.experimental.pallas import tpu as pltpu


def _round_up(x, m):
    return ((x + m - 1) // m) * m


def _make_mlp_link_kernel(num_layers):
    """Fused kernel: (num_layers-1) x (Linear+ReLU) then a final Linear with
    out_channels == 1.  All activations are lane-dense (c, tile_n)."""

    def kernel(*refs):
        xi_ref, xj_ref = refs[0], refs[1]
        o_ref = refs[-1]                      # (1, 1, tile_n)
        wb = refs[2:-1]                       # w0, b0, w1, b1, ...

        # x = x_i * x_j in the input dtype (f32); single cast of the product to
        # bf16 feeds the MXU natively on all generations.
        prod = (xi_ref[...] * xj_ref[...]).astype(jnp.bfloat16)   # (tile_n, c_in)

        h = None
        h_bf16 = None
        for l in range(num_layers):
            w = wb[2 * l][...]                # (c_out, c_in), bf16
            b = wb[2 * l + 1][...]            # (c_out, 1),   f32
            if l == 0:
                # (c_hid, c_in) . (tile_n, c_in)^T -> (c_hid, tile_n)
                # (contract-last-dims pattern, same as flash-attention QK^T).
                h = jax.lax.dot_general(
                    w, prod, (((1,), (1,)), ((), ())),
                    preferred_element_type=jnp.float32)
            else:
                # (c_out, c_in) @ (c_in, tile_n) -> (c_out, tile_n)
                h = jax.lax.dot_general(
                    w, h_bf16, (((1,), (0,)), ((), ())),
                    preferred_element_type=jnp.float32)
            h = h + b                          # bias broadcast along lanes
            if l < num_layers - 1:
                # TODO(synk): training-mode F.dropout would need pltpu.prng_seed
                # + pltpu.stateful_bernoulli; eval-mode dropout is an identity.
                h = jnp.maximum(h, 0.0)
                h_bf16 = h.astype(jnp.bfloat16)

        o_ref[0] = h.astype(o_ref.dtype)       # (1, tile_n), lane-dense

    return kernel


def link_predictor_mlp(x_i, x_j, params, *, tile_n=8192):
    """Fused eval-mode LinkPredictor('mlp') forward.

    params: [(W0 [c_hid, c_in], b0 [c_hid, 1]), ...,
             (W_last [1, c_prev], b_last [1, 1])]
      All weights keep PyTorch's [out, in] layout; biases are column vectors.
      The output dtype matches the input dtype (bf16 in -> bf16 logits out);
      matmuls use bf16 operands with f32 accumulation (intentional, tiny
      accuracy tradeoff vs the f32 PyTorch module).
    """
    N, C_in = x_i.shape
    assert x_j.shape == (N, C_in)
    w_last, b_last = params[-1]
    assert w_last.shape[0] == 1 and b_last.shape == (1, 1), \
        "lane-dense output path requires out_channels == 1"
    num_layers = len(params)
    out_dtype = x_i.dtype

    # Tile selection: as big as allowed (amortizes the ~0.35us/grid-step
    # pipeline overhead), rounded to 128, but aim for >= 2 grid steps so the
    # "parallel" axis can shard across v7x's two TensorCores.
    cap = max(128, _round_up(tile_n, 128))
    n128 = _round_up(N, 128)
    if n128 <= 128:
        tile = 128
    else:
        tile = max(128, min(cap, _round_up(pl.cdiv(n128, 2), 128)))
    num_tiles = pl.cdiv(N, tile)

    # No jnp.pad and no dtype cast of the big inputs: the ragged last block
    # reads unspecified rows past N; those columns stay isolated and their
    # output lanes are discarded by the [:N] slice below.
    flat_args = [x_i, x_j]
    in_specs = [
        pl.BlockSpec((tile, C_in), lambda i: (i, 0)),
        pl.BlockSpec((tile, C_in), lambda i: (i, 0)),
    ]
    for w, b in params:
        # Weights are tiny and resident (constant block index => no re-DMA);
        # cast them to bf16 once here so the MXU gets native bf16 operands.
        flat_args += [w.astype(jnp.bfloat16), b.astype(jnp.float32)]
        in_specs += [
            pl.BlockSpec(w.shape, lambda i: (0, 0)),
            pl.BlockSpec(b.shape, lambda i: (0, 0)),
        ]

    # Explicit VMEM accounting: the (tile, C_in) f32 input blocks are
    # lane-padded to 128 in VMEM -> 2 inputs x 2 buffers x tile*512 B, plus
    # ~tile*512 B of lane-dense intermediates / output.  Give headroom and cap
    # under v7x's 64 MiB physical VMEM.
    per_step_bytes = tile * 2048 + tile * 512
    vmem_limit = max(32 << 20, min(56 << 20, per_step_bytes + (16 << 20)))

    out = pl.pallas_call(
        _make_mlp_link_kernel(num_layers),
        out_shape=jax.ShapeDtypeStruct((num_tiles, 1, tile), out_dtype),
        grid_spec=pltpu.PrefetchScalarGridSpec(
            num_scalar_prefetch=0,
            grid=(num_tiles,),
            in_specs=in_specs,
            out_specs=pl.BlockSpec((1, 1, tile), lambda i: (i, 0, 0)),
        ),
        compiler_params=pltpu.CompilerParams(
            dimension_semantics=("parallel",),   # megacore sharding on v7x
            vmem_limit_bytes=vmem_limit),
    )(*flat_args)

    # Undo the lane-dense layout and ragged tail: (num_tiles, 1, tile) -> (N, 1).
    return out.reshape(num_tiles * tile, 1)[:N]


def init_params(key, in_channels, hidden_channels, out_channels, num_layers):
    """torch.nn.Linear default init (U(+-1/sqrt(fan_in))).  Weights keep
    PyTorch's [out, in] layout; biases are column vectors (c_out, 1)."""
    assert out_channels == 1, "kernel implements the out_channels==1 predictor"
    dims = [in_channels] + [hidden_channels] * (num_layers - 1) + [out_channels]
    params = []
    for li in range(num_layers):
        c_in, c_out = dims[li], dims[li + 1]
        key, kw, kb = jax.random.split(key, 3)
        bound = 1.0 / jnp.sqrt(jnp.float32(c_in))
        w = jax.random.uniform(kw, (c_out, c_in), jnp.float32, -bound, bound)
        b = jax.random.uniform(kb, (c_out, 1), jnp.float32, -bound, bound)
        params.append((w, b))
    return params


def reference_mlp_f32(x_i, x_j, params):
    """Exact f32 reference matching the PyTorch module."""
    x = x_i * x_j
    for w, b in params[:-1]:
        x = jnp.maximum(x @ w.T + b.T, 0.0)
    w_last, b_last = params[-1]
    return x @ w_last.T + b_last.T


def reference_mlp_matched(x_i, x_j, params):
    """Reference that mimics the kernel's bf16-operand / f32-accumulate path."""
    bf = lambda a: a.astype(jnp.bfloat16).astype(jnp.float32)
    x = bf(x_i * x_j)
    for w, b in params[:-1]:
        x = bf(jnp.maximum(x @ bf(w).T + b.T, 0.0))
    w_last, b_last = params[-1]
    return x @ bf(w_last).T + b_last.T


if __name__ == "__main__":
    # Small shapes consistent with the module: num_layers=3, in=hidden=32, out=1.
    # N=300 deliberately exercises the ragged-last-block path (not a multiple
    # of 128) with no wrapper-side padding.
    N, C_IN, C_HID, C_OUT, NUM_LAYERS = 300, 32, 32, 1, 3

    key = jax.random.PRNGKey(0)
    k_xi, k_xj, k_p = jax.random.split(key, 3)
    x_i = jax.random.normal(k_xi, (N, C_IN), jnp.float32)
    x_j = jax.random.normal(k_xj, (N, C_IN), jnp.float32)
    params = init_params(k_p, C_IN, C_HID, C_OUT, NUM_LAYERS)

    # Default (2 tiles of 256 for N=300) and an explicit small-tile grid run
    # (3 tiles of 128, last one ragged).
    out_big = jax.block_until_ready(link_predictor_mlp(x_i, x_j, params))
    out_multi = jax.block_until_ready(
        link_predictor_mlp(x_i, x_j, params, tile_n=128))

    ref_matched = reference_mlp_matched(x_i, x_j, params)
    ref_f32 = reference_mlp_f32(x_i, x_j, params)

    assert out_big.shape == (N, C_OUT)
    assert out_multi.shape == (N, C_OUT)
    # Tight check vs the precision-matched reference.
    assert jnp.allclose(out_big, ref_matched, atol=2e-3, rtol=2e-3), \
        float(jnp.max(jnp.abs(out_big - ref_matched)))
    assert jnp.allclose(out_multi, ref_matched, atol=2e-3, rtol=2e-3), \
        float(jnp.max(jnp.abs(out_multi - ref_matched)))
    # Sanity check vs the exact f32 PyTorch semantics (bf16 operand rounding).
    assert jnp.allclose(out_big, ref_f32, atol=3e-2, rtol=3e-2), \
        float(jnp.max(jnp.abs(out_big - ref_f32)))

    print("KERNEL_OK")
</pallas_src>

<mosaic_0001>
module attributes {stable_mosaic.version = 11 : i64} {
  func.func @kernel(%arg0: i32, %arg1: memref<256x32xf32, #tpu.memory_space<vmem>>, %arg2: memref<256x32xf32, #tpu.memory_space<vmem>>, %arg3: memref<32x32xbf16, #tpu.memory_space<vmem>>, %arg4: memref<32x1xf32, #tpu.memory_space<vmem>>, %arg5: memref<32x32xbf16, #tpu.memory_space<vmem>>, %arg6: memref<32x1xf32, #tpu.memory_space<vmem>>, %arg7: memref<1x32xbf16, #tpu.memory_space<vmem>>, %arg8: memref<1x1xf32, #tpu.memory_space<vmem>>, %arg9: memref<1x1x256xf32, #tpu.memory_space<vmem>>) attributes {dimension_semantics = [#tpu.dimension_semantics<parallel>], iteration_bounds = array<i64: 2>, scalar_prefetch = 0 : i64, scratch_operands = 0 : i64, tpu.core_type = #tpu.core_type<tc>, window_params = [{transform_indices = @transform_0, window_bounds = array<i64: 256, 32>}, {transform_indices = @transform_1, window_bounds = array<i64: 256, 32>}, {pipeline_mode = #tpu.pipeline_mode<synchronous>, transform_indices = @transform_2, window_bounds = array<i64: 32, 32>}, {pipeline_mode = #tpu.pipeline_mode<synchronous>, transform_indices = @transform_3, window_bounds = array<i64: 32, 1>}, {pipeline_mode = #tpu.pipeline_mode<synchronous>, transform_indices = @transform_4, window_bounds = array<i64: 32, 32>}, {pipeline_mode = #tpu.pipeline_mode<synchronous>, transform_indices = @transform_5, window_bounds = array<i64: 32, 1>}, {pipeline_mode = #tpu.pipeline_mode<synchronous>, transform_indices = @transform_6, window_bounds = array<i64: 1, 32>}, {pipeline_mode = #tpu.pipeline_mode<synchronous>, transform_indices = @transform_7, window_bounds = array<i64: 1, 1>}, {transform_indices = @transform_8, window_bounds = array<i64: 1, 1, 256>}]} {
    %c0 = arith.constant 0 : index
    %c0_0 = arith.constant 0 : index
    %0 = vector.load %arg1[%c0, %c0_0] : memref<256x32xf32, #tpu.memory_space<vmem>>, vector<256x32xf32>
    %c0_1 = arith.constant 0 : index
    %c0_2 = arith.constant 0 : index
    %1 = vector.load %arg2[%c0_1, %c0_2] : memref<256x32xf32, #tpu.memory_space<vmem>>, vector<256x32xf32>
    %2 = arith.mulf %0, %1 : vector<256x32xf32>
    %3 = arith.truncf %2 : vector<256x32xf32> to vector<256x32xbf16>
    %c0_3 = arith.constant 0 : index
    %c0_4 = arith.constant 0 : index
    %4 = vector.load %arg3[%c0_3, %c0_4] : memref<32x32xbf16, #tpu.memory_space<vmem>>, vector<32x32xbf16>
    %c0_5 = arith.constant 0 : index
    %c0_6 = arith.constant 0 : index
    %5 = vector.load %arg4[%c0_5, %c0_6] : memref<32x1xf32, #tpu.memory_space<vmem>>, vector<32x1xf32>
    %cst = arith.constant dense<0.000000e+00> : vector<32x256xf32>
    %6 = tpu.matmul %4, %3, %cst {dimension_numbers = #tpu.dot_dimension_numbers<[1], [1], [0], [0], [0, 0, 1, 0], [], []>} : vector<32x32xbf16>, vector<256x32xbf16>, vector<32x256xf32> -> vector<32x256xf32>
    %7 = vector.broadcast %5 : vector<32x1xf32> to vector<32x256xf32>
    %8 = arith.addf %6, %7 : vector<32x256xf32>
    %cst_7 = arith.constant 0.000000e+00 : f32
    %9 = vector.broadcast %cst_7 : f32 to vector<32x256xf32>
    %10 = arith.maximumf %8, %9 : vector<32x256xf32>
    %11 = arith.truncf %10 : vector<32x256xf32> to vector<32x256xbf16>
    %c0_8 = arith.constant 0 : index
    %c0_9 = arith.constant 0 : index
    %12 = vector.load %arg5[%c0_8, %c0_9] : memref<32x32xbf16, #tpu.memory_space<vmem>>, vector<32x32xbf16>
    %c0_10 = arith.constant 0 : index
    %c0_11 = arith.constant 0 : index
    %13 = vector.load %arg6[%c0_10, %c0_11] : memref<32x1xf32, #tpu.memory_space<vmem>>, vector<32x1xf32>
    %cst_12 = arith.constant dense<0.000000e+00> : vector<32x256xf32>
    %14 = tpu.matmul %12, %11, %cst_12 {dimension_numbers = #tpu.dot_dimension_numbers<[1], [0], [0], [1], [0, 0, 1, 1], [], []>} : vector<32x32xbf16>, vector<32x256xbf16>, vector<32x256xf32> -> vector<32x256xf32>
    %15 = vector.broadcast %13 : vector<32x1xf32> to vector<32x256xf32>
    %16 = arith.addf %14, %15 : vector<32x256xf32>
    %cst_13 = arith.constant 0.000000e+00 : f32
    %17 = vector.broadcast %cst_13 : f32 to vector<32x256xf32>
    %18 = arith.maximumf %16, %17 : vector<32x256xf32>
    %19 = arith.truncf %18 : vector<32x256xf32> to vector<32x256xbf16>
    %c0_14 = arith.constant 0 : index
    %c0_15 = arith.constant 0 : index
    %20 = vector.load %arg7[%c0_14, %c0_15] : memref<1x32xbf16, #tpu.memory_space<vmem>>, vector<1x32xbf16>
    %c0_16 = arith.constant 0 : index
    %c0_17 = arith.constant 0 : index
    %21 = vector.load %arg8[%c0_16, %c0_17] : memref<1x1xf32, #tpu.memory_space<vmem>>, vector<1x1xf32>
    %cst_18 = arith.constant dense<0.000000e+00> : vector<1x256xf32>
    %22 = tpu.matmul %20, %19, %cst_18 {dimension_numbers = #tpu.dot_dimension_numbers<[1], [0], [0], [1], [0, 0, 1, 1], [], []>} : vector<1x32xbf16>, vector<32x256xbf16>, vector<1x256xf32> -> vector<1x256xf32>
    %23 = vector.broadcast %21 : vector<1x1xf32> to vector<1x256xf32>
    %24 = arith.addf %22, %23 : vector<1x256xf32>
    %c0_19 = arith.constant 0 : index
    %c0_20 = arith.constant 0 : index
    %c0_21 = arith.constant 0 : index
    %25 = vector.load %arg9[%c0_19, %c0_20, %c0_21] : memref<1x1x256xf32, #tpu.memory_space<vmem>>, vector<1x1x256xf32>
    %26 = vector.shape_cast %25 : vector<1x1x256xf32> to vector<1x256xf32>
    %27 = vector.shape_cast %24 : vector<1x256xf32> to vector<1x1x256xf32>
    tpu.vector_store %arg9[%c0_19, %c0_20, %c0_21], %27 {strides = array<i32>} : memref<1x1x256xf32, #tpu.memory_space<vmem>>, vector<1x1x256xf32>,
    return
  }
  func.func @transform_0(%arg0: i32) -> (i32, i32) {
    %c0_i32 = arith.constant 0 : i32
    %c0_i32_0 = arith.constant 0 : i32
    return %arg0, %c0_i32 : i32, i32
  }
  func.func @transform_1(%arg0: i32) -> (i32, i32) {
    %c0_i32 = arith.constant 0 : i32
    %c0_i32_0 = arith.constant 0 : i32
    return %arg0, %c0_i32 : i32, i32
  }
  func.func @transform_2(%arg0: i32) -> (i32, i32) {
    %c0_i32 = arith.constant 0 : i32
    %c0_i32_0 = arith.constant 0 : i32
    %c0_i32_1 = arith.constant 0 : i32
    return %c0_i32, %c0_i32_0 : i32, i32
  }
  func.func @transform_3(%arg0: i32) -> (i32, i32) {
    %c0_i32 = arith.constant 0 : i32
    %c0_i32_0 = arith.constant 0 : i32
    %c0_i32_1 = arith.constant 0 : i32
    return %c0_i32, %c0_i32_0 : i32, i32
  }
  func.func @transform_4(%arg0: i32) -> (i32, i32) {
    %c0_i32 = arith.constant 0 : i32
    %c0_i32_0 = arith.constant 0 : i32
    %c0_i32_1 = arith.constant 0 : i32
    return %c0_i32, %c0_i32_0 : i32, i32
  }
  func.func @transform_5(%arg0: i32) -> (i32, i32) {
    %c0_i32 = arith.constant 0 : i32
    %c0_i32_0 = arith.constant 0 : i32
    %c0_i32_1 = arith.constant 0 : i32
    return %c0_i32, %c0_i32_0 : i32, i32
  }
  func.func @transform_6(%arg0: i32) -> (i32, i32) {
    %c0_i32 = arith.constant 0 : i32
    %c0_i32_0 = arith.constant 0 : i32
    %c0_i32_1 = arith.constant 0 : i32
    return %c0_i32, %c0_i32_0 : i32, i32
  }
  func.func @transform_7(%arg0: i32) -> (i32, i32) {
    %c0_i32 = arith.constant 0 : i32
    %c0_i32_0 = arith.constant 0 : i32
    %c0_i32_1 = arith.constant 0 : i32
    return %c0_i32, %c0_i32_0 : i32, i32
  }
  func.func @transform_8(%arg0: i32) -> (i32, i32, i32) {
    %c0_i32 = arith.constant 0 : i32
    %c0_i32_0 = arith.constant 0 : i32
    %c0_i32_1 = arith.constant 0 : i32
    return %arg0, %c0_i32, %c0_i32_0 : i32, i32, i32
  }
}

</mosaic_0001>

<llo_original>
// kernel: tpu_custom_call.1
$region0: #{tpu_custom_call.1}
  #allocation0 [shape = 'u32[]', space=smem, size = 0x4, offset = 0x4, fixed_abs, tag = 'smem constant byte address 0x4 - core index']
  #allocation1 [shape = 'u32[72,128]{1,0:T(1,128)}', space=vmem, size = 0x9000, scoped, tag = 'internal scratch']
  #allocation2 [shape = 'f32[1,1]{1,0:T(1,128)S(1)}', space=vmem, size = 0x200, scoped, tag = 'scoped memory for tpu_custom_call.1']
  %s0 = inlined_call_operand.vmem [shape: f32[300,32], index: 0, kind: input, shape index: {}]
  %s1 = inlined_call_operand.vmem [shape: f32[300,32], index: 1, kind: input, shape index: {}]
  %s2 = inlined_call_operand.vmem [shape: bf16[32,32], index: 2, kind: input, shape index: {}]
  %s3 = inlined_call_operand.vmem [shape: f32[32,1], index: 3, kind: input, shape index: {}]
  %s4 = inlined_call_operand.vmem [shape: bf16[32,32], index: 4, kind: input, shape index: {}]
  %s5 = inlined_call_operand.vmem [shape: f32[32,1], index: 5, kind: input, shape index: {}]
  %s6 = inlined_call_operand.vmem [shape: bf16[1,32], index: 6, kind: input, shape index: {}]
  %s7 = inlined_call_operand.<no memory space> [shape: f32[1,1], index: 7, kind: input, shape index: {}]
  %s8 = inlined_call_operand.hbm [shape: f32[2,1,256], index: 8, kind: output, shape index: {}]
  %s9 = sld [smem:[#allocation0]]
  $region65: #{tpu_custom_call.1} parent=0
    _
  %s11 = ssub.s32 1, %s9
  %s12 = scalar_select 0, %s11, %s9
  %v13 = vstv %s7
  %14 = vst [vmem:[#allocation2] sm:$0x1] %v13
  $region1: #{tpu_custom_call.1} parent=0
    #allocation3 [shape = 'u8[2048]{0}', space=vmem, size = 0x800, scoped, tag = 'output window, operand 0']
    #allocation4 [shape = 's32[2]{0}', space=sflag, size = 0x8, scoped, tag = 'scoped memory for tpu_custom_call.1']
    %15 = vsyncpa [#allocation4], 0
    %s16 = scalar_lea.sflag [#allocation4], 1
    %17 = vsyncpa %s16, 0
    loop: start=0, step=1, limit=4
    $region2: #{tpu_custom_call.1} parent=1 // loop_pre_header
      _
    $region3: #{tpu_custom_call.1} parent=1 // loop_header
      %s19 = sphi 0, %s23
      %p20 = scmp.ge.s32.totalorder %s19, 4
      %s29 = sphi 0, %s31
      %s32 = sphi 0, %s29
      %s33 = sphi 0, %s32
      %s49 = sphi 0, %s33
      %s55 = sphi 0, %s57
      %s58 = sphi 0, %s55
      %s59 = sphi 0, %s58
      %s75 = sphi 0, %s59
      %s79 = sphi 0, %s79
      %s81 = sphi 0, %s79
      %s82 = sphi 0, %s81
      %s96 = sphi 0, %s82
      %s100 = sphi 0, %s100
      %s102 = sphi 0, %s100
      %s103 = sphi 0, %s102
      %s117 = sphi 0, %s103
      %s121 = sphi 0, %s121
      %s123 = sphi 0, %s121
      %s124 = sphi 0, %s123
      %s138 = sphi 0, %s124
      %s142 = sphi 0, %s142
      %s144 = sphi 0, %s142
      %s145 = sphi 0, %s144
      %s159 = sphi 0, %s145
      %s163 = sphi 0, %s163
      %s165 = sphi 0, %s163
      %s166 = sphi 0, %s165
      %s180 = sphi 0, %s166
      %s184 = sphi 0, %s184
      %s186 = sphi 0, %s184
      %s187 = sphi 0, %s186
      %s201 = sphi 0, %s187
      %s207 = sphi 0, %s209
      %s210 = sphi 0, %s207
      %s211 = sphi 0, %s210
      %s227 = sphi 0, %s211
    $region4: #{tpu_custom_call.1} parent=1 // loop_header_branch
      %22 = sbr.rel (%p20) target = $region8
    $region5: #{tpu_custom_call.1} parent=1 // loop_body
      %s24 = ssub.s32 %s19, 1
      %s25 = ssub.s32 %s19, 2
      %s26 = sadd.s32 %s19, 1
      %s27 = ssub.s32 %s19, %s26
      %p28 = scmp.eq.s32.totalorder %s27, 0
      %s30 = sadd.s32 %s29, 1
      %s31 = scalar_select %p28, %s29, %s30
      %p34 = pneg %p28
      %p35 = scmp.eq.s32.totalorder %s19, 1
      %p36 = por %p34, %p35
      %p37 = scmp.ne.s32.totalorder %s29, %s32
      %p38 = scmp.eq.s32.totalorder %s19, 0
      %p39 = por %p37, %p38
      %p40 = scmp.ne.s32.totalorder %s29, %s32
      %p41 = scmp.eq.s32.totalorder %s24, 1
      %p42 = por %p40, %p41
      %p43 = scmp.ne.s32.totalorder %s32, %s33
      %p44 = scmp.eq.s32.totalorder %s24, 0
      %p45 = por %p43, %p44
      %p46 = scmp.ne.s32.totalorder %s32, %s33
      %p47 = scmp.eq.s32.totalorder %s25, 1
      %p48 = por %p46, %p47
      %p50 = scmp.ne.s32.totalorder %s33, %s49
      %p51 = scmp.eq.s32.totalorder %s25, 0
      %p52 = por %p50, %p51
      %s53 = ssub.s32 %s19, %s26
      %p54 = scmp.eq.s32.totalorder %s53, 0
      %s56 = sadd.s32 %s55, 1
      %s57 = scalar_select %p54, %s55, %s56
      %p60 = pneg %p54
      %p61 = scmp.eq.s32.totalorder %s19, 1
      %p62 = por %p60, %p61
      %p63 = scmp.ne.s32.totalorder %s55, %s58
      %p64 = scmp.eq.s32.totalorder %s19, 0
      %p65 = por %p63, %p64
      %p66 = scmp.ne.s32.totalorder %s55, %s58
      %p67 = scmp.eq.s32.totalorder %s24, 1
      %p68 = por %p66, %p67
      %p69 = scmp.ne.s32.totalorder %s58, %s59
      %p70 = scmp.eq.s32.totalorder %s24, 0
      %p71 = por %p69, %p70
      %p72 = scmp.ne.s32.totalorder %s58, %s59
      %p73 = scmp.eq.s32.totalorder %s25, 1
      %p74 = por %p72, %p73
      %p76 = scmp.ne.s32.totalorder %s59, %s75
      %p77 = scmp.eq.s32.totalorder %s25, 0
      %p78 = por %p76, %p77
      %s80 = sadd.s32 %s79, 1
      %p83 = scmp.eq.s32.totalorder %s19, 1
      %p84 = scmp.ne.s32.totalorder %s79, %s81
      %p85 = scmp.eq.s32.totalorder %s19, 0
      %p86 = por %p84, %p85
      %p87 = scmp.ne.s32.totalorder %s79, %s81
      %p88 = scmp.eq.s32.totalorder %s24, 1
      %p89 = por %p87, %p88
      %p90 = scmp.ne.s32.totalorder %s81, %s82
      %p91 = scmp.eq.s32.totalorder %s24, 0
      %p92 = por %p90, %p91
      %p93 = scmp.ne.s32.totalorder %s81, %s82
      %p94 = scmp.eq.s32.totalorder %s25, 1
      %p95 = por %p93, %p94
      %p97 = scmp.ne.s32.totalorder %s82, %s96
      %p98 = scmp.eq.s32.totalorder %s25, 0
      %p99 = por %p97, %p98
      %s101 = sadd.s32 %s100, 1
      %p104 = scmp.eq.s32.totalorder %s19, 1
      %p105 = scmp.ne.s32.totalorder %s100, %s102
      %p106 = scmp.eq.s32.totalorder %s19, 0
      %p107 = por %p105, %p106
      %p108 = scmp.ne.s32.totalorder %s100, %s102
      %p109 = scmp.eq.s32.totalorder %s24, 1
      %p110 = por %p108, %p109
      %p111 = scmp.ne.s32.totalorder %s102, %s103
      %p112 = scmp.eq.s32.totalorder %s24, 0
      %p113 = por %p111, %p112
      %p114 = scmp.ne.s32.totalorder %s102, %s103
      %p115 = scmp.eq.s32.totalorder %s25, 1
      %p116 = por %p114, %p115
      %p118 = scmp.ne.s32.totalorder %s103, %s117
      %p119 = scmp.eq.s32.totalorder %s25, 0
      %p120 = por %p118, %p119
      %s122 = sadd.s32 %s121, 1
      %p125 = scmp.eq.s32.totalorder %s19, 1
      %p126 = scmp.ne.s32.totalorder %s121, %s123
      %p127 = scmp.eq.s32.totalorder %s19, 0
      %p128 = por %p126, %p127
      %p129 = scmp.ne.s32.totalorder %s121, %s123
      %p130 = scmp.eq.s32.totalorder %s24, 1
      %p131 = por %p129, %p130
      %p132 = scmp.ne.s32.totalorder %s123, %s124
      %p133 = scmp.eq.s32.totalorder %s24, 0
      %p134 = por %p132, %p133
      %p135 = scmp.ne.s32.totalorder %s123, %s124
      %p136 = scmp.eq.s32.totalorder %s25, 1
      %p137 = por %p135, %p136
      %p139 = scmp.ne.s32.totalorder %s124, %s138
      %p140 = scmp.eq.s32.totalorder %s25, 0
      %p141 = por %p139, %p140
      %s143 = sadd.s32 %s142, 1
      %p146 = scmp.eq.s32.totalorder %s19, 1
      %p147 = scmp.ne.s32.totalorder %s142, %s144
      %p148 = scmp.eq.s32.totalorder %s19, 0
      %p149 = por %p147, %p148
      %p150 = scmp.ne.s32.totalorder %s142, %s144
      %p151 = scmp.eq.s32.totalorder %s24, 1
      %p152 = por %p150, %p151
      %p153 = scmp.ne.s32.totalorder %s144, %s145
      %p154 = scmp.eq.s32.totalorder %s24, 0
      %p155 = por %p153, %p154
      %p156 = scmp.ne.s32.totalorder %s144, %s145
      %p157 = scmp.eq.s32.totalorder %s25, 1
      %p158 = por %p156, %p157
      %p160 = scmp.ne.s32.totalorder %s145, %s159
      %p161 = scmp.eq.s32.totalorder %s25, 0
      %p162 = por %p160, %p161
      %s164 = sadd.s32 %s163, 1
      %p167 = scmp.eq.s32.totalorder %s19, 1
      %p168 = scmp.ne.s32.totalorder %s163, %s165
      %p169 = scmp.eq.s32.totalorder %s19, 0
      %p170 = por %p168, %p169
      %p171 = scmp.ne.s32.totalorder %s163, %s165
      %p172 = scmp.eq.s32.totalorder %s24, 1
      %p173 = por %p171, %p172
      %p174 = scmp.ne.s32.totalorder %s165, %s166
      %p175 = scmp.eq.s32.totalorder %s24, 0
      %p176 = por %p174, %p175
      %p177 = scmp.ne.s32.totalorder %s165, %s166
      %p178 = scmp.eq.s32.totalorder %s25, 1
      %p179 = por %p177, %p178
      %p181 = scmp.ne.s32.totalorder %s166, %s180
      %p182 = scmp.eq.s32.totalorder %s25, 0
      %p183 = por %p181, %p182
      %s185 = sadd.s32 %s184, 1
      %p188 = scmp.eq.s32.totalorder %s19, 1
      %p189 = scmp.ne.s32.totalorder %s184, %s186
      %p190 = scmp.eq.s32.totalorder %s19, 0
      %p191 = por %p189, %p190
      %p192 = scmp.ne.s32.totalorder %s184, %s186
      %p193 = scmp.eq.s32.totalorder %s24, 1
      %p194 = por %p192, %p193
      %p195 = scmp.ne.s32.totalorder %s186, %s187
      %p196 = scmp.eq.s32.totalorder %s24, 0
      %p197 = por %p195, %p196
      %p198 = scmp.ne.s32.totalorder %s186, %s187
      %p199 = scmp.eq.s32.totalorder %s25, 1
      %p200 = por %p198, %p199
      %p202 = scmp.ne.s32.totalorder %s187, %s201
      %p203 = scmp.eq.s32.totalorder %s25, 0
      %p204 = por %p202, %p203
      %s205 = ssub.s32 %s19, %s26
      %p206 = scmp.eq.s32.totalorder %s205, 0
      %s208 = sadd.s32 %s207, 1
      %s209 = scalar_select %p206, %s207, %s208
      %p212 = pneg %p206
      %p213 = scmp.eq.s32.totalorder %s19, 1
      %p214 = por %p212, %p213
      %p215 = scmp.ne.s32.totalorder %s207, %s210
      %p216 = scmp.eq.s32.totalorder %s19, 0
      %p217 = por %p215, %p216
      %p218 = scmp.ne.s32.totalorder %s207, %s210
      %p219 = scmp.eq.s32.totalorder %s24, 1
      %p220 = por %p218, %p219
      %p221 = scmp.ne.s32.totalorder %s210, %s211
      %p222 = scmp.eq.s32.totalorder %s24, 0
      %p223 = por %p221, %p222
      %p224 = scmp.ne.s32.totalorder %s210, %s211
      %p225 = scmp.eq.s32.totalorder %s25, 1
      %p226 = por %p224, %p225
      %p228 = scmp.ne.s32.totalorder %s211, %s227
      %p229 = scmp.eq.s32.totalorder %s25, 0
      %p230 = por %p228, %p229
      %p231 = scmp.le.s32.totalorder 1, %s19
      %p232 = scmp.lt.s32.totalorder %s19, 3
      %p233 = pnand %p231, %p232
      %p234 = pneg %p233
      // Predicated region
      $region9: #{tpu_custom_call.1} parent=5 // pred_check
        _
      $region10: #{tpu_custom_call.1} parent=5 // pred_check_branch
        %236 = sbr.rel (%p233) target = $region12
      $region11: #{tpu_custom_call.1} parent=5 // pred_region
        %s237 = ssub.s32 %s19, 1
        // Predicated region
        $region13: #{tpu_custom_call.1} parent=11 // pred_check
          %p238 = pneg %p92
        $region14: #{tpu_custom_call.1} parent=11 // pred_check_branch
          %240 = sbr.rel (%p238) target = $region16
        $region15: #{tpu_custom_call.1} parent=11 // pred_region
          _
        $region16: #{tpu_custom_call.1} parent=11 // pred_fallthru
          _
        // Predicated region
        $region17: #{tpu_custom_call.1} parent=11 // pred_check
          %p241 = pneg %p113
        $region18: #{tpu_custom_call.1} parent=11 // pred_check_branch
          %243 = sbr.rel (%p241) target = $region20
        $region19: #{tpu_custom_call.1} parent=11 // pred_region
          _
        $region20: #{tpu_custom_call.1} parent=11 // pred_fallthru
          _
        // Predicated region
        $region21: #{tpu_custom_call.1} parent=11 // pred_check
          %p244 = pneg %p134
        $region22: #{tpu_custom_call.1} parent=11 // pred_check_branch
          %246 = sbr.rel (%p244) target = $region24
        $region23: #{tpu_custom_call.1} parent=11 // pred_region
          _
        $region24: #{tpu_custom_call.1} parent=11 // pred_fallthru
          _
        // Predicated region
        $region25: #{tpu_custom_call.1} parent=11 // pred_check
          %p247 = pneg %p155
        $region26: #{tpu_custom_call.1} parent=11 // pred_check_branch
          %249 = sbr.rel (%p247) target = $region28
        $region27: #{tpu_custom_call.1} parent=11 // pred_region
          _
        $region28: #{tpu_custom_call.1} parent=11 // pred_fallthru
          _
        // Predicated region
        $region29: #{tpu_custom_call.1} parent=11 // pred_check
          %p250 = pneg %p176
        $region30: #{tpu_custom_call.1} parent=11 // pred_check_branch
          %252 = sbr.rel (%p250) target = $region32
        $region31: #{tpu_custom_call.1} parent=11 // pred_region
          _
        $region32: #{tpu_custom_call.1} parent=11 // pred_fallthru
          _
        // Predicated region
        $region33: #{tpu_custom_call.1} parent=11 // pred_check
          %p253 = pneg %p197
        $region34: #{tpu_custom_call.1} parent=11 // pred_check_branch
          %255 = sbr.rel (%p253) target = $region36
        $region35: #{tpu_custom_call.1} parent=11 // pred_region
          _
        $region36: #{tpu_custom_call.1} parent=11 // pred_fallthru
          _
      $region12: #{tpu_custom_call.1} parent=5 // pred_fallthru
        _
      %p256 = scmp.lt.s32.totalorder %s19, 2
      // Predicated region
      $region37: #{tpu_custom_call.1} parent=5 // pred_check
        %p257 = pneg %p256
      $region38: #{tpu_custom_call.1} parent=5 // pred_check_branch
        %259 = sbr.rel (%p257) target = $region40
      $region39: #{tpu_custom_call.1} parent=5 // pred_region
        // Predicated region
        $region41: #{tpu_custom_call.1} parent=39 // pred_check
          %p260 = pneg %p39
        $region42: #{tpu_custom_call.1} parent=39 // pred_check_branch
          %262 = sbr.rel (%p260) target = $region44
        $region43: #{tpu_custom_call.1} parent=39 // pred_region
          %s263 = smul.u32 32, %s19
          %s264 = ssub.s32 38, %s263
          %p265 = scmp.lt.s32.totalorder %s264, 32
          %s266 = scalar_select %p265, %s264, 32
          %s267 = smul.u32 8, %s266
          %p268 = scmp.lt.s32.totalorder %s263, 37
          %s269 = scalar_select %p268, %s263, 37
          %s270 = smul.addr %s269, 8
          %s271 = scalar_lea.vmem %s0, %s270
          %s272 = smul.u32 32, %s19
          %s273 = ssub.s32 38, %s272
          %p274 = scmp.lt.s32.totalorder %s273, 32
          %s275 = scalar_select %p274, %s273, 32
          %s276 = smul.u32 8, %s275
        $region44: #{tpu_custom_call.1} parent=39 // pred_fallthru
          _
        // Predicated region
        $region45: #{tpu_custom_call.1} parent=39 // pred_check
          %p277 = pneg %p65
        $region46: #{tpu_custom_call.1} parent=39 // pred_check_branch
          %279 = sbr.rel (%p277) target = $region48
        $region47: #{tpu_custom_call.1} parent=39 // pred_region
          %s280 = smul.u32 32, %s19
          %s281 = ssub.s32 38, %s280
          %p282 = scmp.lt.s32.totalorder %s281, 32
          %s283 = scalar_select %p282, %s281, 32
          %s284 = smul.u32 8, %s283
          %p285 = scmp.lt.s32.totalorder %s280, 37
          %s286 = scalar_select %p285, %s280, 37
          %s287 = smul.addr %s286, 8
          %s288 = scalar_lea.vmem %s1, %s287
          %s289 = smul.u32 32, %s19
          %s290 = ssub.s32 38, %s289
          %p291 = scmp.lt.s32.totalorder %s290, 32
          %s292 = scalar_select %p291, %s290, 32
          %s293 = smul.u32 8, %s292
        $region48: #{tpu_custom_call.1} parent=39 // pred_fallthru
          _
      $region40: #{tpu_custom_call.1} parent=5 // pred_fallthru
        _
      %p294 = scmp.le.s32.totalorder 1, %s19
      %p295 = scmp.lt.s32.totalorder %s19, 3
      %p296 = pnand %p294, %p295
      %p297 = pneg %p296
      // Predicated region
      $region49: #{tpu_custom_call.1} parent=5 // pred_check
        _
      $region50: #{tpu_custom_call.1} parent=5 // pred_check_branch
        %299 = sbr.rel (%p296) target = $region52
      $region51: #{tpu_custom_call.1} parent=5 // pred_region
        %s300 = ssub.s32 %s19, 1
        %s301 = smul.u32 32, %s24
        %s302 = ssub.s32 38, %s301
        %p303 = scmp.lt.s32.totalorder %s302, 32
        %s304 = scalar_select %p303, %s302, 32
        %s305 = smul.u32 8, %s304
        %p306 = scmp.lt.s32.totalorder %s301, 37
        %s307 = scalar_select %p306, %s301, 37
        %s308 = smul.addr %s307, 8
        %s309 = scalar_lea.vmem %s0, %s308
        %p310 = pneg %p45
        %p311 = pneg %p42
        %s312 = smul.u32 32, %s24
        %s313 = ssub.s32 38, %s312
        %p314 = scmp.lt.s32.totalorder %s313, 32
        %s315 = scalar_select %p314, %s313, 32
        %s316 = smul.u32 8, %s315
        %p317 = scmp.lt.s32.totalorder %s312, 37
        %s318 = scalar_select %p317, %s312, 37
        %s319 = smul.addr %s318, 8
        %s320 = scalar_lea.vmem %s1, %s319
        %p321 = pneg %p71
        %p322 = pneg %p68
        %p323 = pneg %p92
        %p324 = pneg %p89
        %p325 = pneg %p113
        %p326 = pneg %p110
        %p327 = pneg %p134
        %p328 = pneg %p131
        %p329 = pneg %p155
        %p330 = pneg %p152
        %p331 = pneg %p176
        %p332 = pneg %p173
        %p333 = pneg %p197
        %p334 = pneg %p194
        %p335 = pneg %p223
        %p336 = pneg %p220
        %s337 = sand.u32 %s210, 1
        %s338 = scalar_lea.sflag [#allocation4], %s337
        %s339 = sand.u32 %s210, 1
        %s340 = smul.addr %s339, 2
        %s341 = scalar_lea.vmem [#allocation3], %s340
        %s342 = smul.u32 32, %s24
        %s343 = ssub.s32 38, %s342
        %p344 = scmp.lt.s32.totalorder %s343, 32
        %s345 = scalar_select %p344, %s343, 32
        %s346 = smul.u32 8, %s345
        %p347 = scmp.lt.s32.totalorder %s342, 37
        %s348 = scalar_select %p347, %s342, 37
        %s349 = smul.addr %s348, 8
        %s350 = scalar_lea.vmem %s0, %s349
        %s351 = smul.u32 32, %s24
        %s352 = ssub.s32 38, %s351
        %p353 = scmp.lt.s32.totalorder %s352, 32
        %s354 = scalar_select %p353, %s352, 32
        %s355 = smul.u32 8, %s354
        %s356 = smul.u32 32, %s24
        %s357 = ssub.s32 38, %s356
        %p358 = scmp.lt.s32.totalorder %s357, 32
        %s359 = scalar_select %p358, %s357, 32
        %s360 = smul.u32 8, %s359
        %p361 = scmp.lt.s32.totalorder %s356, 37
        %s362 = scalar_select %p361, %s356, 37
        %s363 = smul.addr %s362, 8
        %s364 = scalar_lea.vmem %s1, %s363
        %s365 = smul.u32 32, %s24
        %s366 = ssub.s32 38, %s365
        %p367 = scmp.lt.s32.totalorder %s366, 32
        %s368 = scalar_select %p367, %s366, 32
        %s369 = smul.u32 8, %s368
        %v371 = vld [vmem:[%s350] sm:$0xff]
        %v372 = vld [vmem:[%s350 + $0x8] sm:$0xff]
        %v373 = vld [vmem:[%s350 + $0x10] sm:$0xff]
        %v374 = vld [vmem:[%s350 + $0x18] sm:$0xff]
        %v375 = vld [vmem:[%s350 + $0x20] sm:$0xff]
        %v376 = vld [vmem:[%s350 + $0x28] sm:$0xff]
        %v377 = vld [vmem:[%s350 + $0x30] sm:$0xff]
        %v378 = vld [vmem:[%s350 + $0x38] sm:$0xff]
        %v379 = vld [vmem:[%s350 + $0x40] sm:$0xff]
        %v380 = vld [vmem:[%s350 + $0x48] sm:$0xff]
        %v381 = vld [vmem:[%s350 + $0x50] sm:$0xff]
        %v382 = vld [vmem:[%s350 + $0x58] sm:$0xff]
        %v383 = vld [vmem:[%s350 + $0x60] sm:$0xff]
        %v384 = vld [vmem:[%s350 + $0x68] sm:$0xff]
        %v385 = vld [vmem:[%s350 + $0x70] sm:$0xff]
        %v386 = vld [vmem:[%s350 + $0x78] sm:$0xff]
        %v387 = vld [vmem:[%s350 + $0x80] sm:$0xff]
        %v388 = vld [vmem:[%s350 + $0x88] sm:$0xff]
        %v389 = vld [vmem:[%s350 + $0x90] sm:$0xff]
        %v390 = vld [vmem:[%s350 + $0x98] sm:$0xff]
        %v391 = vld [vmem:[%s350 + $0xa0] sm:$0xff]
        %v392 = vld [vmem:[%s350 + $0xa8] sm:$0xff]
        %v393 = vld [vmem:[%s350 + $0xb0] sm:$0xff]
        %v394 = vld [vmem:[%s350 + $0xb8] sm:$0xff]
        %v395 = vld [vmem:[%s350 + $0xc0] sm:$0xff]
        %v396 = vld [vmem:[%s350 + $0xc8] sm:$0xff]
        %v397 = vld [vmem:[%s350 + $0xd0] sm:$0xff]
        %v398 = vld [vmem:[%s350 + $0xd8] sm:$0xff]
        %v399 = vld [vmem:[%s350 + $0xe0] sm:$0xff]
        %v400 = vld [vmem:[%s350 + $0xe8] sm:$0xff]
        %v401 = vld [vmem:[%s350 + $0xf0] sm:$0xff]
        %v402 = vld [vmem:[%s350 + $0xf8] sm:$0xff]
        %v403 = vld [vmem:[%s364] sm:$0xff]
        %v404 = vld [vmem:[%s364 + $0x8] sm:$0xff]
        %v405 = vld [vmem:[%s364 + $0x10] sm:$0xff]
        %v406 = vld [vmem:[%s364 + $0x18] sm:$0xff]
        %v407 = vld [vmem:[%s364 + $0x20] sm:$0xff]
        %v408 = vld [vmem:[%s364 + $0x28] sm:$0xff]
        %v409 = vld [vmem:[%s364 + $0x30] sm:$0xff]
        %v410 = vld [vmem:[%s364 + $0x38] sm:$0xff]
        %v411 = vld [vmem:[%s364 + $0x40] sm:$0xff]
        %v412 = vld [vmem:[%s364 + $0x48] sm:$0xff]
        %v413 = vld [vmem:[%s364 + $0x50] sm:$0xff]
        %v414 = vld [vmem:[%s364 + $0x58] sm:$0xff]
        %v415 = vld [vmem:[%s364 + $0x60] sm:$0xff]
        %v416 = vld [vmem:[%s364 + $0x68] sm:$0xff]
        %v417 = vld [vmem:[%s364 + $0x70] sm:$0xff]
        %v418 = vld [vmem:[%s364 + $0x78] sm:$0xff]
        %v419 = vld [vmem:[%s364 + $0x80] sm:$0xff]
        %v420 = vld [vmem:[%s364 + $0x88] sm:$0xff]
        %v421 = vld [vmem:[%s364 + $0x90] sm:$0xff]
        %v422 = vld [vmem:[%s364 + $0x98] sm:$0xff]
        %v423 = vld [vmem:[%s364 + $0xa0] sm:$0xff]
        %v424 = vld [vmem:[%s364 + $0xa8] sm:$0xff]
        %v425 = vld [vmem:[%s364 + $0xb0] sm:$0xff]
        %v426 = vld [vmem:[%s364 + $0xb8] sm:$0xff]
        %v427 = vld [vmem:[%s364 + $0xc0] sm:$0xff]
        %v428 = vld [vmem:[%s364 + $0xc8] sm:$0xff]
        %v429 = vld [vmem:[%s364 + $0xd0] sm:$0xff]
        %v430 = vld [vmem:[%s364 + $0xd8] sm:$0xff]
        %v431 = vld [vmem:[%s364 + $0xe0] sm:$0xff]
        %v432 = vld [vmem:[%s364 + $0xe8] sm:$0xff]
        %v433 = vld [vmem:[%s364 + $0xf0] sm:$0xff]
        %v434 = vld [vmem:[%s364 + $0xf8] sm:$0xff]
        %v435 = vmul.f32 %v371, %v403
        %v436 = vmul.f32 %v372, %v404
        %v437 = vmul.f32 %v373, %v405
        %v438 = vmul.f32 %v374, %v406
        %v439 = vmul.f32 %v375, %v407
        %v440 = vmul.f32 %v376, %v408
        %v441 = vmul.f32 %v377, %v409
        %v442 = vmul.f32 %v378, %v410
        %v443 = vmul.f32 %v379, %v411
        %v444 = vmul.f32 %v380, %v412
        %v445 = vmul.f32 %v381, %v413
        %v446 = vmul.f32 %v382, %v414
        %v447 = vmul.f32 %v383, %v415
        %v448 = vmul.f32 %v384, %v416
        %v449 = vmul.f32 %v385, %v417
        %v450 = vmul.f32 %v386, %v418
        %v451 = vmul.f32 %v387, %v419
        %v452 = vmul.f32 %v388, %v420
        %v453 = vmul.f32 %v389, %v421
        %v454 = vmul.f32 %v390, %v422
        %v455 = vmul.f32 %v391, %v423
        %v456 = vmul.f32 %v392, %v424
        %v457 = vmul.f32 %v393, %v425
        %v458 = vmul.f32 %v394, %v426
        %v459 = vmul.f32 %v395, %v427
        %v460 = vmul.f32 %v396, %v428
        %v461 = vmul.f32 %v397, %v429
        %v462 = vmul.f32 %v398, %v430
        %v463 = vmul.f32 %v399, %v431
        %v464 = vmul.f32 %v400, %v432
        %v465 = vmul.f32 %v401, %v433
        %v466 = vmul.f32 %v402, %v434
        %v467 = vpack.c.bf16 %v436, %v435
        %v468 = vpack.c.bf16 %v438, %v437
        %v469 = vpack.c.bf16 %v440, %v439
        %v470 = vpack.c.bf16 %v442, %v441
        %v471 = vpack.c.bf16 %v444, %v443
        %v472 = vpack.c.bf16 %v446, %v445
        %v473 = vpack.c.bf16 %v448, %v447
        %v474 = vpack.c.bf16 %v450, %v449
        %v475 = vpack.c.bf16 %v452, %v451
        %v476 = vpack.c.bf16 %v454, %v453
        %v477 = vpack.c.bf16 %v456, %v455
        %v478 = vpack.c.bf16 %v458, %v457
        %v479 = vpack.c.bf16 %v460, %v459
        %v480 = vpack.c.bf16 %v462, %v461
        %v481 = vpack.c.bf16 %v464, %v463
        %v482 = vpack.c.bf16 %v466, %v465
        %v483 = vld [vmem:[%s2] sm:$0xf]
        %v484 = vld [vmem:[%s2 + $0x4] sm:$0xf]
        %v485 = vld [vmem:[%s2 + $0x8] sm:$0xf]
        %v486 = vld [vmem:[%s2 + $0xc] sm:$0xf]
        %v487 = vld [vmem:[%s3] sm:$0xff]
        %v488 = vld [vmem:[%s3 + $0x8] sm:$0xff]
        %v489 = vld [vmem:[%s3 + $0x10] sm:$0xff]
        %v490 = vld [vmem:[%s3 + $0x18] sm:$0xff]
        %492 = vset.pattern.permute.xlu0 0
        %493 = vperm.xlu0 %492, %v487
        %v494 = vpop.permute.xlu0 %493
        %497 = vset.pattern.permute.xlu0 0
        %498 = vperm.xlu0 %497, %v488
        %v499 = vpop.permute.xlu0 %498
        %502 = vset.pattern.permute.xlu0 0
        %503 = vperm.xlu0 %502, %v489
        %v504 = vpop.permute.xlu0 %503
        %507 = vset.pattern.permute.xlu0 0
        %508 = vperm.xlu0 %507, %v490
        %v509 = vpop.permute.xlu0 %508
        %v515 = vunpack.c.l.b16 %v483
        %v516 = vunpack.c.l.b16 %v484
        %v517 = vunpack.c.l.b16 %v485
        %v518 = vunpack.c.l.b16 %v486
        %v519 = vpack.c.b16 %v516, %v515
        %v520 = vpack.c.b16 %v518, %v517
        %vm521 = vcmask 261120
        %v523 = vsel %vm521, %v519, 0
        %v526 = vsel %vm521, %v520, 0
        %v529 = vsel %vm521, %v467, 0
        %v532 = vsel %vm521, %v468, 0
        %v535 = vsel %vm521, %v469, 0
        %v538 = vsel %vm521, %v470, 0
        %v541 = vsel %vm521, %v471, 0
        %v544 = vsel %vm521, %v472, 0
        %v547 = vsel %vm521, %v473, 0
        %v550 = vsel %vm521, %v474, 0
        %v553 = vsel %vm521, %v475, 0
        %v556 = vsel %vm521, %v476, 0
        %v559 = vsel %vm521, %v477, 0
        %v562 = vsel %vm521, %v478, 0
        %v565 = vsel %vm521, %v479, 0
        %v568 = vsel %vm521, %v480, 0
        %v571 = vsel %vm521, %v481, 0
        %v574 = vsel %vm521, %v482, 0
        %576 = vmatpush.bf16.xpose.msra.mxu0 %v550
        %577 = vmatpush.bf16.xpose.msra.mxu0 %v547
        %578 = vmatpush.bf16.xpose.msra.mxu0 %v544
        %579 = vmatpush.bf16.xpose.msra.mxu0 %v541
        %580 = vmatpush.bf16.xpose.msra.mxu0 %v538
        %581 = vmatpush.bf16.xpose.msra.mxu0 %v535
        %582 = vmatpush.bf16.xpose.msra.mxu0 %v532
        %583 = vmatpush.bf16.xpose.msra.mxu0 %v529
        %584 = vmatmul.bf16.gmra.mxu0 %v523
        %v585 = vpop.f32.mrf.mxu0
        %v586 = vadd.f32 %v494, %v585
        %v587 = vpop.f32.mrf.mxu0
        %v588 = vadd.f32 %v499, %v587
        %589 = vmatmul.bf16.gmra.mxu0 %v526
        %v590 = vpop.f32.mrf.mxu0
        %v591 = vadd.f32 %v504, %v590
        %v592 = vpop.f32.mrf.mxu0
        %v593 = vadd.f32 %v509, %v592
        %594 = vdwg.mxu0
        %595 = vmatpush.bf16.xpose.msra.mxu0 %v574
        %596 = vmatpush.bf16.xpose.msra.mxu0 %v571
        %597 = vmatpush.bf16.xpose.msra.mxu0 %v568
        %598 = vmatpush.bf16.xpose.msra.mxu0 %v565
        %599 = vmatpush.bf16.xpose.msra.mxu0 %v562
        %600 = vmatpush.bf16.xpose.msra.mxu0 %v559
        %601 = vmatpush.bf16.xpose.msra.mxu0 %v556
        %602 = vmatpush.bf16.xpose.msra.mxu0 %v553
        %603 = vmatmul.bf16.gmra.mxu0 %v523
        %v604 = vpop.f32.mrf.mxu0
        %v605 = vadd.f32 %v494, %v604
        %v606 = vpop.f32.mrf.mxu0
        %v607 = vadd.f32 %v499, %v606
        %608 = vmatmul.bf16.gmra.mxu0 %v526
        %v609 = vpop.f32.mrf.mxu0
        %v610 = vadd.f32 %v504, %v609
        %v611 = vpop.f32.mrf.mxu0
        %v612 = vadd.f32 %v509, %v611
        %613 = vdwg.mxu0
        %v614 = vmax.f32 %v586, 0.0
        %v615 = vmax.f32 %v605, 0.0
        %v616 = vmax.f32 %v588, 0.0
        %v617 = vmax.f32 %v607, 0.0
        %v618 = vmax.f32 %v591, 0.0
        %v619 = vmax.f32 %v610, 0.0
        %v620 = vmax.f32 %v593, 0.0
        %v621 = vmax.f32 %v612, 0.0
        %v622 = vpack.c.bf16 %v616, %v614
        %v623 = vpack.c.bf16 %v617, %v615
        %v624 = vpack.c.bf16 %v620, %v618
        %v625 = vpack.c.bf16 %v621, %v619
        %v626 = vld [vmem:[%s4] sm:$0xf]
        %v627 = vld [vmem:[%s4 + $0x4] sm:$0xf]
        %v628 = vld [vmem:[%s4 + $0x8] sm:$0xf]
        %v629 = vld [vmem:[%s4 + $0xc] sm:$0xf]
        %v630 = vld [vmem:[%s5] sm:$0xff]
        %v631 = vld [vmem:[%s5 + $0x8] sm:$0xff]
        %v632 = vld [vmem:[%s5 + $0x10] sm:$0xff]
        %v633 = vld [vmem:[%s5 + $0x18] sm:$0xff]
        %635 = vset.pattern.permute.xlu0 0
        %636 = vperm.xlu0 %635, %v630
        %v637 = vpop.permute.xlu0 %636
        %640 = vset.pattern.permute.xlu0 0
        %641 = vperm.xlu0 %640, %v631
        %v642 = vpop.permute.xlu0 %641
        %645 = vset.pattern.permute.xlu0 0
        %646 = vperm.xlu0 %645, %v632
        %v647 = vpop.permute.xlu0 %646
        %650 = vset.pattern.permute.xlu0 0
        %651 = vperm.xlu0 %650, %v633
        %v652 = vpop.permute.xlu0 %651
        %v658 = vunpack.c.l.b16 %v626
        %v659 = vunpack.c.l.b16 %v627
        %v660 = vunpack.c.l.b16 %v628
        %v661 = vunpack.c.l.b16 %v629
        %v662 = vpack.c.b16 %v659, %v658
        %v663 = vpack.c.b16 %v661, %v660
        %v665 = vsel %vm521, %v662, 0
        %v668 = vsel %vm521, %v663, 0
        %670 = vmatpush.bf16.msra.mxu0 0
        %671 = vmatpush.bf16.msra.mxu0 0
        %672 = vmatpush.bf16.msra.mxu0 0
        %673 = vmatpush.bf16.msra.mxu0 0
        %674 = vmatpush.bf16.msra.mxu0 0
        %675 = vmatpush.bf16.msra.mxu0 0
        %676 = vmatpush.bf16.msra.mxu0 %v624
        %677 = vmatpush.bf16.msra.mxu0 %v622
        %678 = vmatmul.bf16.gmra.mxu0 %v665
        %v679 = vpop.f32.mrf.mxu0
        %v680 = vadd.f32 %v637, %v679
        %v681 = vpop.f32.mrf.mxu0
        %v682 = vadd.f32 %v642, %v681
        %683 = vmatmul.bf16.gmra.mxu0 %v668
        %v684 = vpop.f32.mrf.mxu0
        %v685 = vadd.f32 %v647, %v684
        %v686 = vpop.f32.mrf.mxu0
        %v687 = vadd.f32 %v652, %v686
        %688 = vdwg.mxu0
        %689 = vmatpush.bf16.msra.mxu0 0
        %690 = vmatpush.bf16.msra.mxu0 0
        %691 = vmatpush.bf16.msra.mxu0 0
        %692 = vmatpush.bf16.msra.mxu0 0
        %693 = vmatpush.bf16.msra.mxu0 0
        %694 = vmatpush.bf16.msra.mxu0 0
        %695 = vmatpush.bf16.msra.mxu0 %v625
        %696 = vmatpush.bf16.msra.mxu0 %v623
        %697 = vmatmul.bf16.gmra.mxu0 %v665
        %v698 = vpop.f32.mrf.mxu0
        %v699 = vadd.f32 %v637, %v698
        %v700 = vpop.f32.mrf.mxu0
        %v701 = vadd.f32 %v642, %v700
        %702 = vmatmul.bf16.gmra.mxu0 %v668
        %v703 = vpop.f32.mrf.mxu0
        %v704 = vadd.f32 %v647, %v703
        %v705 = vpop.f32.mrf.mxu0
        %v706 = vadd.f32 %v652, %v705
        %707 = vdwg.mxu0
        %v708 = vmax.f32 %v680, 0.0
        %v709 = vmax.f32 %v699, 0.0
        %v710 = vmax.f32 %v682, 0.0
        %v711 = vmax.f32 %v701, 0.0
        %v712 = vmax.f32 %v685, 0.0
        %v713 = vmax.f32 %v704, 0.0
        %v714 = vmax.f32 %v687, 0.0
        %v715 = vmax.f32 %v706, 0.0
        %v716 = vpack.c.bf16 %v710, %v708
        %v717 = vpack.c.bf16 %v711, %v709
        %v718 = vpack.c.bf16 %v714, %v712
        %v719 = vpack.c.bf16 %v715, %v713
        %v720 = vld [vmem:[%s6] sm:$0x1]
        %v721 = vld [vmem:[#allocation2] sm:$0x1]
        %723 = vset.pattern.permute.xlu0 0
        %724 = vperm.xlu0 %723, %v721
        %v725 = vpop.permute.xlu0 %724
        %v727 = vperm.slane %v725, 0
        %v729 = vsel %vm521, %v720, 0
        %731 = vmatpush.bf16.msra.mxu0 0
        %732 = vmatpush.bf16.msra.mxu0 0
        %733 = vmatpush.bf16.msra.mxu0 0
        %734 = vmatpush.bf16.msra.mxu0 0
        %735 = vmatpush.bf16.msra.mxu0 0
        %736 = vmatpush.bf16.msra.mxu0 0
        %737 = vmatpush.bf16.msra.mxu0 %v718
        %738 = vmatpush.bf16.msra.mxu0 %v716
        %739 = vmatmul.bf16.gmra.mxu0 %v729
        %v740 = vpop.f32.mrf.mxu0
        %v741 = vadd.f32 %v727, %v740
        %v742 = vpop.f32.mrf.mxu0
        %743 = vdwg.mxu0
        %744 = vmatpush.bf16.msra.mxu0 0
        %745 = vmatpush.bf16.msra.mxu0 0
        %746 = vmatpush.bf16.msra.mxu0 0
        %747 = vmatpush.bf16.msra.mxu0 0
        %748 = vmatpush.bf16.msra.mxu0 0
        %749 = vmatpush.bf16.msra.mxu0 0
        %750 = vmatpush.bf16.msra.mxu0 %v719
        %751 = vmatpush.bf16.msra.mxu0 %v717
        %752 = vmatmul.bf16.gmra.mxu0 %v729
        %v753 = vpop.f32.mrf.mxu0
        %v754 = vadd.f32 %v727, %v753
        %v755 = vpop.f32.mrf.mxu0
        %756 = vdwg.mxu0
        %v759 = vrot.slane %v754, 7
        %vm760 = vcmask 1040384
        %v761 = vsel %vm760, %v741, %v759
        %v763 = vlaneseq
        %vm764 = vcmp.ge.s32.totalorder %v763, 0
        %vm765 = vcmp.lt.s32.totalorder %v763, 256
        %vm766 = vmand %vm764, %vm765
        %767 = vst.msk [vmem:[%s341] sm:$0x3] %vm766, %v761
        %s768 = sand.u32 %s210, 1
        %s769 = scalar_lea.sflag [#allocation4], %s768
        %s770 = sand.u32 %s210, 1
        %s771 = smul.addr %s770, 2
        %s772 = scalar_lea.vmem [#allocation3], %s771
        // Predicated region
        $region53: #{tpu_custom_call.1} parent=51 // pred_check
          %p773 = pneg %p220
        $region54: #{tpu_custom_call.1} parent=51 // pred_check_branch
          %775 = sbr.rel (%p773) target = $region56
        $region55: #{tpu_custom_call.1} parent=51 // pred_region
          %777 = vsyncadd %s769, 0
          %s778 = smul.addr %s24, 2
          %s779 = scalar_lea.hbm %s8, %s778
          %s781 = sshll.u32 %s772, 4
          %s782 = int_to_ptr.vmem [resolvable:$true] %s781
          %s783 = sshll.u32 %s779, 4
          %s784 = int_to_ptr.hbm [resolvable:$true] %s783
          %786 = dma.vmem_to_hbm [thread:$0]  %s782, 32, %s784, %s769
        $region56: #{tpu_custom_call.1} parent=51 // pred_fallthru
          _
      $region52: #{tpu_custom_call.1} parent=5 // pred_fallthru
        _
      %p787 = scmp.le.s32.totalorder 2, %s19
      // Predicated region
      $region57: #{tpu_custom_call.1} parent=5 // pred_check
        %p788 = pneg %p787
      $region58: #{tpu_custom_call.1} parent=5 // pred_check_branch
        %790 = sbr.rel (%p788) target = $region60
      $region59: #{tpu_custom_call.1} parent=5 // pred_region
        %s791 = ssub.s32 %s19, 2
        // Predicated region
        $region61: #{tpu_custom_call.1} parent=59 // pred_check
          %p792 = pneg %p226
        $region62: #{tpu_custom_call.1} parent=59 // pred_check_branch
          %794 = sbr.rel (%p792) target = $region64
        $region63: #{tpu_custom_call.1} parent=59 // pred_region
          %s795 = sand.u32 %s211, 1
          %s796 = scalar_lea.sflag [#allocation4], %s795
          %s797 = sand.u32 %s211, 1
          %s798 = smul.addr %s797, 2
          %s799 = scalar_lea.vmem [#allocation3], %s798
          %801 = dma.done %s796, 32
        $region64: #{tpu_custom_call.1} parent=59 // pred_fallthru
          _
      $region60: #{tpu_custom_call.1} parent=5 // pred_fallthru
        _
    $region6: #{tpu_custom_call.1} parent=1 // loop_footer
      %s23 = sadd.s32 1, %s19
    $region7: #{tpu_custom_call.1} parent=1 // loop_footer_branch
      %18 = sbr.rel target = $region3
    $region8: #{tpu_custom_call.1} parent=1 // loop_exit
      _
    %802 = vsyncpa [#allocation4], 1
    %s803 = scalar_lea.sflag [#allocation4], 1
    %804 = vsyncpa %s803, 1

</llo_original>
